<compile_context>
chip_gen: v7x
topology: tpu7x:2x2x1
jax: 0.10.0
libtpu: 0.0.40
codegen_flags: <defaults>
</compile_context>

<pallas_src>
import math

import jax
import jax.numpy as jnp
from jax.experimental import pallas as pl
from jax.experimental.pallas import tpu as pltpu

# ----------------------------- problem dims ---------------------------------
B, S, DIM = 2, 8, 32          # batch, seq, feature dim (Slot_Gate(dim=32))
HID = DIM // 2                # fc1 output dim = dim / 2


# ------------------------------ fused kernel --------------------------------
def _slot_gate_kernel(x_ref, p_ref, o_ref):
    x = x_ref[...]                       # (N, DIM) f32
    w = p_ref[0:1, :]                    # (1, DIM)  folded W_eff row
    b = p_ref[1:2, 0:1]                  # (1, 1)    folded bias
    # Folded matvec: VPU elementwise multiply + XLU lane reduce (no MXU).
    z = jnp.sum(x * w, axis=-1, keepdims=True) + b        # (N, 1) f32
    o_ref[...] = jax.nn.sigmoid(z)       # EUP transcendental (lax.logistic)


def slot_gate_forward(packed_params, x):
    """x: (..., DIM) float32 -> (..., 1) float32, matching Slot_Gate.forward."""
    lead = x.shape[:-1]
    n = math.prod(lead) if lead else 1
    x2d = x.reshape(n, x.shape[-1]).astype(jnp.float32)

    out2d = pl.pallas_call(
        _slot_gate_kernel,
        out_shape=jax.ShapeDtypeStruct((n, 1), jnp.float32),
        in_specs=[
            pl.BlockSpec(memory_space=pltpu.MemorySpace.VMEM),  # x
            pl.BlockSpec(memory_space=pltpu.MemorySpace.VMEM),  # packed params
        ],
        out_specs=pl.BlockSpec(memory_space=pltpu.MemorySpace.VMEM),
    )(x2d, packed_params)

    return out2d.reshape(*lead, 1)


# ----------------------------- parameter init -------------------------------
def init_params(key):
    """Mimics torch.nn.Linear default init (uniform +-1/sqrt(fan_in)).

    Weights are stored transposed as (in, out) so x @ W + b applies directly.
    """
    k1, k2, k3, k4 = jax.random.split(key, 4)
    bnd1 = 1.0 / math.sqrt(DIM)
    bnd2 = 1.0 / math.sqrt(HID)
    return {
        'w1': jax.random.uniform(k1, (DIM, HID), jnp.float32, -bnd1, bnd1),
        'b1': jax.random.uniform(k2, (1, HID), jnp.float32, -bnd1, bnd1),
        'w2': jax.random.uniform(k3, (HID, 1), jnp.float32, -bnd2, bnd2),
        'b2': jax.random.uniform(k4, (1, 1), jnp.float32, -bnd2, bnd2),
    }


def fold_params(params):
    """One-time host-side fold of fc1/fc2 into a single (2, DIM) VMEM array.

    Row 0: W_eff = W1 @ W2 (length DIM).  Row 1, lane 0: b_eff = b1 @ W2 + b2.
    Mathematically identical to the two-layer module (no nonlinearity between).
    """
    w_eff = params['w1'] @ params['w2']                    # (DIM, 1)
    b_eff = params['b1'] @ params['w2'] + params['b2']     # (1, 1)
    packed = jnp.zeros((2, DIM), jnp.float32)
    packed = packed.at[0, :].set(w_eff[:, 0])
    packed = packed.at[1, 0].set(b_eff[0, 0])
    return packed


# --------------------------- pure-JAX reference ------------------------------
def slot_gate_ref(params, x):
    """Unfolded two-linear reference, matching the PyTorch module exactly."""
    h = x @ params['w1'] + params['b1']
    z = h @ params['w2'] + params['b2']
    return jax.nn.sigmoid(z)


# --------------------------------- main --------------------------------------
if __name__ == "__main__":
    key = jax.random.PRNGKey(0)
    k_param, k_x = jax.random.split(key)

    params = init_params(k_param)
    packed = fold_params(params)                    # one-time param transform
    x = jax.random.normal(k_x, (B, S, DIM), dtype=jnp.float32)

    out = slot_gate_forward(packed, x)
    jax.block_until_ready(out)

    assert out.shape == (B, S, 1), out.shape

    ref = slot_gate_ref(params, x)
    assert jnp.allclose(out, ref, atol=1e-5, rtol=1e-5), \
        float(jnp.max(jnp.abs(out - ref)))

    print("KERNEL_OK")
</pallas_src>

<mosaic_0001>
module attributes {stable_mosaic.version = 11 : i64} {
  func.func @_slot_gate_kernel(%arg0: memref<16x32xf32, #tpu.memory_space<vmem>>, %arg1: memref<2x32xf32, #tpu.memory_space<vmem>>, %arg2: memref<16x1xf32, #tpu.memory_space<vmem>>) attributes {dimension_semantics = [], scalar_prefetch = 0 : i64, scratch_operands = 0 : i64, tpu.core_type = #tpu.core_type<tc>} {
    %c0 = arith.constant 0 : index
    %c0_0 = arith.constant 0 : index
    %0 = vector.load %arg0[%c0, %c0_0] : memref<16x32xf32, #tpu.memory_space<vmem>>, vector<16x32xf32>
    %c0_1 = arith.constant 0 : index
    %c0_2 = arith.constant 0 : index
    %1 = vector.load %arg1[%c0_1, %c0_2] : memref<2x32xf32, #tpu.memory_space<vmem>>, vector<1x32xf32>
    %c1 = arith.constant 1 : index
    %c0_3 = arith.constant 0 : index
    %2 = vector.load %arg1[%c1, %c0_3] : memref<2x32xf32, #tpu.memory_space<vmem>>, vector<1x1xf32>
    %3 = vector.broadcast %1 : vector<1x32xf32> to vector<16x32xf32>
    %4 = arith.mulf %0, %3 : vector<16x32xf32>
    %cst = arith.constant dense<0.000000e+00> : vector<16xf32>
    %5 = vector.multi_reduction <add>, %4, %cst [1] : vector<16x32xf32> to vector<16xf32>
    %6 = vector.shape_cast %5 : vector<16xf32> to vector<16x1xf32>
    %7 = vector.broadcast %2 : vector<1x1xf32> to vector<16x1xf32>
    %8 = arith.addf %6, %7 : vector<16x1xf32>
    %9 = arith.negf %8 : vector<16x1xf32>
    %10 = math.exp %9 : vector<16x1xf32>
    %cst_4 = arith.constant 1.000000e+00 : f32
    %11 = vector.broadcast %cst_4 : f32 to vector<16x1xf32>
    %12 = arith.addf %11, %10 : vector<16x1xf32>
    %13 = arith.divf %11, %12 : vector<16x1xf32>
    %c0_5 = arith.constant 0 : index
    %c0_6 = arith.constant 0 : index
    %14 = vector.load %arg2[%c0_5, %c0_6] : memref<16x1xf32, #tpu.memory_space<vmem>>, vector<16x1xf32>
    tpu.vector_store %arg2[%c0_5, %c0_6], %13 {strides = array<i32>} : memref<16x1xf32, #tpu.memory_space<vmem>>, vector<16x1xf32>,
    return
  }
}

</mosaic_0001>

<llo_original>
// kernel: tpu_custom_call.1
$region0: #{tpu_custom_call.1}
  #allocation0 [shape = 'u32[]', space=smem, size = 0x4, offset = 0x4, fixed_abs, tag = 'smem constant byte address 0x4 - core index']
  #allocation1 [shape = 'u32[144,128]{1,0:T(1,128)}', space=vmem, size = 0x12000, scoped, tag = 'internal scratch']
  %s0 = inlined_call_operand.hbm [shape: f32[16,32], index: 0, kind: input, shape index: {}]
  %s1 = inlined_call_operand.vmem [shape: f32[2,32], index: 1, kind: input, shape index: {}]
  %s2 = inlined_call_operand.vmem [shape: f32[16,1], index: 2, kind: output, shape index: {}]
  %s3 = sld [smem:[#allocation0]]
  $region22: #{tpu_custom_call.1} parent=0
    _
  %s5 = ssub.s32 1, %s3
  %s6 = scalar_select 0, %s5, %s3
  $region1: #{tpu_custom_call.1} parent=0
    #allocation2 [shape = 'u8[8192]{0}', space=vmem, size = 0x2000, scoped, tag = 'input window, operand 0, single buffered']
    #allocation3 [shape = 's32[1]{0}', space=sflag, size = 0x4, scoped, tag = 'scoped memory for tpu_custom_call.1']
    %7 = vsyncpa [#allocation3], 0
    // Predicated region
    $region2: #{tpu_custom_call.1} parent=1 // pred_check
      _
    $region3: #{tpu_custom_call.1} parent=1 // pred_check_branch
      %9 = sbr.rel (0) target = $region5
    $region4: #{tpu_custom_call.1} parent=1 // pred_region
      %s11 = ssub.s32 256, 256
      %12 = vsyncadd [#allocation3], %s11
      %s13 = sshll.u32 [#allocation2], 4
      %s14 = int_to_ptr.vmem [resolvable:$true] %s13
      %19 = dma.hbm_to_vmem [thread:$0]  %s0, 256, %s14, [#allocation3], 128, 128, 8
    $region5: #{tpu_custom_call.1} parent=1 // pred_fallthru
      _
    // Predicated region
    $region6: #{tpu_custom_call.1} parent=1 // pred_check
      _
    $region7: #{tpu_custom_call.1} parent=1 // pred_check_branch
      %21 = sbr.rel (0) target = $region9
    $region8: #{tpu_custom_call.1} parent=1 // pred_region
      _
    $region9: #{tpu_custom_call.1} parent=1 // pred_fallthru
      _
    // Predicated region
    $region10: #{tpu_custom_call.1} parent=1 // pred_check
      _
    $region11: #{tpu_custom_call.1} parent=1 // pred_check_branch
      %23 = sbr.rel (0) target = $region13
    $region12: #{tpu_custom_call.1} parent=1 // pred_region
      %24 = dma.done [#allocation3], 256
    $region13: #{tpu_custom_call.1} parent=1 // pred_fallthru
      _
    %v25 = vld [vmem:[#allocation2] sm:$0xff]
    %v26 = vld [vmem:[#allocation2 + $0x8] sm:$0xff]
    %v27 = vld [vmem:[%s1] sm:$0x1]
    %v28 = vld [vmem:[%s1 + $0x1] sm:$0x1]
    %v29 = vlaneseq
    %v30 = vshrl.u32 %v29, 7
    %v31 = vsub.s32 0, %v30
    %v32 = vrot.slane %v27, %v31
    %v33 = vmul.f32 %v25, %v32
    %v34 = vmul.f32 %v26, %v32
    %vm35 = vcmask 261120
    %v36 = vsel %vm35, %v33, 0.0
    %37 = vadd.xlane.f32.xlu0 %v36
    %v38 = vpop.xlane.xlu0 %37
    %v39 = vsel %vm35, %v34, 0.0
    %40 = vadd.xlane.f32.xlu0 %v39
    %v41 = vpop.xlane.xlu0 %40
    %v42 = vlaneseq
    %v43 = vshrl.u32 %v42, 7
    %v44 = vsub.s32 0, %v43
    %v45 = vrot.slane %v28, %v44
    %v46 = vadd.f32 %v38, %v45
    %v47 = vadd.f32 %v41, %v45
    %v48 = vxor.u32 %v46, 2147483648
    %v49 = vxor.u32 %v47, 2147483648
    %v50 = vmul.f32 %v48, 1.442695
    %v51 = vpow.pop %v50
    %v52 = vmul.f32 %v49, 1.442695
    %v53 = vpow.pop %v52
    %v54 = vadd.f32 %v51, 1.0
    %v55 = vadd.f32 %v53, 1.0
    %v56 = vrcp.pop %v54
    %v57 = vmul.f32 1.0, %v56
    %v58 = vrcp.pop %v55
    %v59 = vmul.f32 1.0, %v58
    %vm60 = vcmask 7168
    %61 = vst.msk [vmem:[%s2] sm:$0xff] %vm60, %v57
    %62 = vst.msk [vmem:[%s2 + $0x8] sm:$0xff] %vm60, %v59
    // Predicated region
    $region14: #{tpu_custom_call.1} parent=1 // pred_check
      _
    $region15: #{tpu_custom_call.1} parent=1 // pred_check_branch
      %64 = sbr.rel (0) target = $region17
    $region16: #{tpu_custom_call.1} parent=1 // pred_region
      _
    $region17: #{tpu_custom_call.1} parent=1 // pred_fallthru
      _
    // Predicated region
    $region18: #{tpu_custom_call.1} parent=1 // pred_check
      _
    $region19: #{tpu_custom_call.1} parent=1 // pred_check_branch
      %66 = sbr.rel (0) target = $region21
    $region20: #{tpu_custom_call.1} parent=1 // pred_region
      _
    $region21: #{tpu_custom_call.1} parent=1 // pred_fallthru
      _
    %67 = vsyncpa [#allocation3], 1

</llo_original>
